<compile_context>
chip_gen: v7x
topology: tpu7x:2x2x1
jax: 0.10.0
libtpu: 0.0.40
codegen_flags: <defaults>
</compile_context>

<pallas_src>
import jax
import jax.numpy as jnp
from jax.experimental import pallas as pl
from jax.experimental.pallas import tpu as pltpu


N_SEM = 8  # ring depth of in-flight row-gather DMAs (one semaphore per slot)


def make_gather_kernel(tile_n, n_sem):
    """Row-gather kernel: out[t, :] = table[ids[base + t], :] for one tile."""

    def kernel(ids_ref, table_ref, out_ref, slab_ref, sems):
        # ids_ref   : SMEM (n_pad,) int32          scalar-prefetched token ids
        # table_ref : HBM  (ntokens, ninp_pad) f32  fused embedding table
        # out_ref   : VMEM (tile_n, ninp_pad)       output tile
        # slab_ref  : VMEM (tile_n, ninp_pad)       gather landing buffer
        # sems      : DMA semaphores (n_sem,)
        base = pl.program_id(0) * tile_n

        def row_copy(t):
            row = ids_ref[base + t]
            return pltpu.make_async_copy(
                table_ref.at[pl.ds(row, 1), :],
                slab_ref.at[pl.ds(t, 1), :],
                sems.at[t % n_sem])

        # Prime the DMA ring.
        @pl.loop(0, min(n_sem, tile_n))
        def _(t):
            row_copy(t).start()

        # Steady state: retire row t, then launch row t + n_sem on the freed
        # semaphore (at most n_sem row DMAs in flight, one per semaphore).
        @pl.loop(0, tile_n)
        def _(t):
            row_copy(t).wait()

            @pl.when(t + n_sem < tile_n)
            def _():
                row_copy(t + n_sem).start()

        # Single lane-dense, unmasked store of the whole tile.
        out_ref[...] = slab_ref[...]

    return kernel


def build_fused_table(head_w, tail_emb_ws, tail_proj_ws, ninp):
    """Build the fused [ntokens, ninp_pad] gather table ONCE (hoisted out of
    the per-call forward path).

    Rows are laid out in original-id order (head cluster first, then each tail
    cluster in order), so a token id is directly its row index.  Each tail
    nn.Linear projection is folded into its embedding table (emb_i @ proj_i,
    with proj_i already stored as (d_i, ninp)), so the kernel is a pure gather.
    """
    ninp_pad = pl.cdiv(ninp, 128) * 128
    parts = [head_w.astype(jnp.float32)]
    for emb_w, proj_w in zip(tail_emb_ws, tail_proj_ws):
        parts.append(emb_w.astype(jnp.float32) @ proj_w.astype(jnp.float32))
    table = jnp.concatenate(parts, axis=0)                  # (ntokens, ninp)
    table = jnp.pad(table, ((0, 0), (0, ninp_pad - ninp)))  # lane-dense rows
    return table


def adaptive_input_forward(ids, table, ninp, tile_n=256):
    """ids: (N,) int32 token ids in [0, ntokens). Returns (N, ninp) float32."""
    n = ids.shape[0]
    ntokens, ninp_pad = table.shape
    itemsize = jnp.dtype(table.dtype).itemsize

    # Token tile: multiple of 8 (sublane), clamped so tiny inputs do not
    # over-pad.  Multiple tiles let the "parallel" grid axis feed both
    # TensorCores on v7x.
    tile_n = int(min(tile_n, max(8, pl.cdiv(n, 8) * 8)))
    n_pad = pl.cdiv(n, tile_n) * tile_n
    # Padding ids are 0 (a valid row); the padded output rows are sliced off.
    ids_pad = jnp.pad(ids.astype(jnp.int32), (0, n_pad - n))

    grid = (n_pad // tile_n,)
    kernel = make_gather_kernel(tile_n, N_SEM)

    # VMEM actually needed: double-buffered output tile + the gather slab.
    # Keep the request well below v7x's 64 MiB physical VMEM per TensorCore.
    vmem_need = 3 * tile_n * ninp_pad * itemsize
    vmem_limit = int(min(max(2 * vmem_need, 4 << 20), 48 << 20))

    # HBM-roofline hint for XLA: row-gather reads + output writeback + ids.
    cost = pl.CostEstimate(
        flops=0,
        transcendentals=0,
        bytes_accessed=int(2 * n_pad * ninp_pad * itemsize + 4 * n_pad))

    out = pl.pallas_call(
        kernel,
        out_shape=jax.ShapeDtypeStruct((n_pad, ninp_pad), table.dtype),
        grid_spec=pltpu.PrefetchScalarGridSpec(
            num_scalar_prefetch=1,                           # ids -> SMEM
            grid=grid,
            in_specs=[pl.BlockSpec(memory_space=pl.ANY)],    # table stays in HBM
            out_specs=pl.BlockSpec((tile_n, ninp_pad), lambda i, ids: (i, 0)),
            scratch_shapes=[
                pltpu.VMEM((tile_n, ninp_pad), table.dtype),
                pltpu.SemaphoreType.DMA((N_SEM,)),
            ]),
        compiler_params=pltpu.CompilerParams(
            dimension_semantics=("parallel",),
            vmem_limit_bytes=vmem_limit),
        cost_estimate=cost,
    )(ids_pad, table)

    return out[:n, :ninp]


def reference_forward(ids, head_w, tail_emb_ws, tail_proj_ws, cutoffs, ntokens, ninp):
    """Pure-JAX f32 reference matching the PyTorch forward (eval mode)."""
    cutoff_values = [0] + list(cutoffs) + [ntokens]
    out = jnp.zeros((ids.shape[0], ninp), jnp.float32)
    for i in range(len(cutoff_values) - 1):
        lo, hi = cutoff_values[i], cutoff_values[i + 1]
        mask = (ids >= lo) & (ids < hi)
        local = jnp.clip(ids - lo, 0, hi - lo - 1)
        if i == 0:
            emb = head_w[local]
        else:
            emb = tail_emb_ws[i - 1][local] @ tail_proj_ws[i - 1]
        out = jnp.where(mask[:, None], emb.astype(jnp.float32), out)
    return out


if __name__ == "__main__":
    # Module hyper-params (small, consistent with AdaptiveInput.__init__)
    ninp = 32
    ntokens = 64
    cutoffs = [16, 32]          # self.cutoffs becomes [16, 32, 64]
    div_value = 2               # tail embedding dims: 16, 8
    n_tokens_seq = 20           # N (sequence length of token ids)

    key = jax.random.PRNGKey(0)
    keys = jax.random.split(key, 2 + 2 * len(cutoffs))
    k_ids, k_head = keys[0], keys[1]
    k_tails = keys[2:]

    ids = jax.random.randint(k_ids, (n_tokens_seq,), 0, ntokens, dtype=jnp.int32)

    # head: nn.Embedding(cutoffs[0], ninp)
    head_w = jax.random.normal(k_head, (cutoffs[0], ninp), jnp.float32) * 0.02

    # tails: nn.Embedding(size_i, d_i) + nn.Linear(d_i, ninp, bias=False)
    full_cut = cutoffs + [ntokens]
    tail_emb_ws, tail_proj_ws = [], []
    for i in range(len(full_cut) - 1):
        d_i = ninp // div_value ** (i + 1)
        size_i = full_cut[i + 1] - full_cut[i]
        ke, kp = k_tails[2 * i], k_tails[2 * i + 1]
        tail_emb_ws.append(jax.random.normal(ke, (size_i, d_i), jnp.float32) * 0.02)
        # PyTorch Linear weight is (ninp, d_i); store transposed (d_i, ninp).
        tail_proj_ws.append(jax.random.normal(kp, (d_i, ninp), jnp.float32) * 0.1)

    # Fused table built once (hoisted out of the per-call forward path).
    table = jax.block_until_ready(
        build_fused_table(head_w, tail_emb_ws, tail_proj_ws, ninp))

    # tile_n=8 exercises multiple grid steps (grid=(3,)) plus token padding.
    out = adaptive_input_forward(ids, table, ninp, tile_n=8)
    out = jax.block_until_ready(out)

    ref = reference_forward(ids, head_w, tail_emb_ws, tail_proj_ws,
                            cutoffs, ntokens, ninp)
    assert out.shape == (n_tokens_seq, ninp) and out.dtype == jnp.float32
    # f32 table, exact row gather; only the pre-folded tail matmul can differ
    # from the reference's gather-then-matmul at float rounding level.
    assert jnp.allclose(out, ref, atol=1e-4, rtol=1e-4), "mismatch vs reference"
    print("KERNEL_OK")
</pallas_src>

<mosaic_0001>
module attributes {stable_mosaic.version = 11 : i64} {
  func.func @kernel(%arg0: i32, %arg1: memref<24xi32, #tpu.memory_space<smem>>, %arg2: memref<64x128xf32, #tpu.memory_space<any>>, %arg3: memref<8x128xf32, #tpu.memory_space<vmem>>, %arg4: memref<8x128xf32, #tpu.memory_space<vmem>>, %arg5: memref<8x!tpu.dma_semaphore, #tpu.memory_space<semaphore_mem>>) attributes {dimension_semantics = [#tpu.dimension_semantics<parallel>], iteration_bounds = array<i64: 3>, scalar_prefetch = 1 : i64, scratch_operands = 2 : i64, tpu.core_type = #tpu.core_type<tc>, window_params = [{}, {transform_indices = @transform_1, window_bounds = array<i64: 8, 128>}]} {
    %c8_i32 = arith.constant 8 : i32
    %0 = arith.muli %arg0, %c8_i32 : i32
    %c0_i32 = arith.constant 0 : i32
    %c8_i32_0 = arith.constant 8 : i32
    %1 = arith.addi %c0_i32, %c8_i32_0 : i32
    %c1_i32 = arith.constant 1 : i32
    scf.for %arg6 = %c0_i32 to %1 step %c1_i32  : i32 {
      %c1_i32_9 = arith.constant 1 : i32
      %5 = arith.muli %arg6, %c1_i32_9 : i32
      %c0_i32_10 = arith.constant 0 : i32
      %6 = arith.addi %c0_i32_10, %5 : i32
      %7 = arith.addi %0, %6 : i32
      %8 = arith.index_cast %7 : i32 to index
      %9 = memref.load %arg1[%8] : memref<24xi32, #tpu.memory_space<smem>>
      %c8_i32_11 = arith.constant 8 : i32
      %c0_i32_12 = arith.constant 0 : i32
      %10 = arith.cmpi eq, %c8_i32_11, %c0_i32_12 : i32
      %c1_i32_13 = arith.constant 1 : i32
      %11 = arith.select %10, %c1_i32_13, %c8_i32_11 : i32
      %12 = arith.remsi %6, %11 : i32
      %c0_i32_14 = arith.constant 0 : i32
      %13 = arith.cmpi ne, %12, %c0_i32_14 : i32
      %c0_i32_15 = arith.constant 0 : i32
      %14 = arith.cmpi slt, %12, %c0_i32_15 : i32
      %c0_i32_16 = arith.constant 0 : i32
      %15 = arith.cmpi slt, %11, %c0_i32_16 : i32
      %16 = arith.xori %14, %15 : i1
      %17 = arith.andi %16, %13 : i1
      %18 = arith.addi %12, %11 : i32
      %19 = arith.select %17, %18, %12 : i32
      %c0_i32_17 = arith.constant 0 : i32
      %20 = tpu.memref_slice %arg2[%9, %c0_i32_17] : memref<64x128xf32, #tpu.memory_space<any>> -> memref<1x128xf32, #tpu.memory_space<any>>
      %c0_i32_18 = arith.constant 0 : i32
      %21 = tpu.memref_slice %arg4[%6, %c0_i32_18] : memref<8x128xf32, #tpu.memory_space<vmem>> -> memref<1x128xf32, #tpu.memory_space<vmem>>
      %22 = tpu.memref_slice %arg5[%19] : memref<8x!tpu.dma_semaphore, #tpu.memory_space<semaphore_mem>> -> memref<1x!tpu.dma_semaphore, #tpu.memory_space<semaphore_mem>>
      %23 = tpu.memref_squeeze %22 : memref<1x!tpu.dma_semaphore, #tpu.memory_space<semaphore_mem>> -> memref<!tpu.dma_semaphore, #tpu.memory_space<semaphore_mem>>
      tpu.enqueue_dma source(%20 : memref<1x128xf32, #tpu.memory_space<any>>) target(%21 : memref<1x128xf32, #tpu.memory_space<vmem>>) target_semaphore(%23 : memref<!tpu.dma_semaphore, #tpu.memory_space<semaphore_mem>>)
    }
    %c8_i32_1 = arith.constant 8 : i32
    %c0_i32_2 = arith.constant 0 : i32
    %c8_i32_3 = arith.constant 8 : i32
    %2 = arith.addi %c0_i32_2, %c8_i32_3 : i32
    %c1_i32_4 = arith.constant 1 : i32
    scf.for %arg6 = %c0_i32_2 to %2 step %c1_i32_4  : i32 {
      %c1_i32_9 = arith.constant 1 : i32
      %5 = arith.muli %arg6, %c1_i32_9 : i32
      %c0_i32_10 = arith.constant 0 : i32
      %6 = arith.addi %c0_i32_10, %5 : i32
      %7 = arith.addi %0, %6 : i32
      %8 = arith.index_cast %7 : i32 to index
      %9 = memref.load %arg1[%8] : memref<24xi32, #tpu.memory_space<smem>>
      %c8_i32_11 = arith.constant 8 : i32
      %c0_i32_12 = arith.constant 0 : i32
      %10 = arith.cmpi eq, %c8_i32_11, %c0_i32_12 : i32
      %c1_i32_13 = arith.constant 1 : i32
      %11 = arith.select %10, %c1_i32_13, %c8_i32_11 : i32
      %12 = arith.remsi %6, %11 : i32
      %c0_i32_14 = arith.constant 0 : i32
      %13 = arith.cmpi ne, %12, %c0_i32_14 : i32
      %c0_i32_15 = arith.constant 0 : i32
      %14 = arith.cmpi slt, %12, %c0_i32_15 : i32
      %c0_i32_16 = arith.constant 0 : i32
      %15 = arith.cmpi slt, %11, %c0_i32_16 : i32
      %16 = arith.xori %14, %15 : i1
      %17 = arith.andi %16, %13 : i1
      %18 = arith.addi %12, %11 : i32
      %19 = arith.select %17, %18, %12 : i32
      %c0_i32_17 = arith.constant 0 : i32
      %20 = tpu.memref_slice %arg2[%9, %c0_i32_17] : memref<64x128xf32, #tpu.memory_space<any>> -> memref<1x128xf32, #tpu.memory_space<any>>
      %c0_i32_18 = arith.constant 0 : i32
      %21 = tpu.memref_slice %arg4[%6, %c0_i32_18] : memref<8x128xf32, #tpu.memory_space<vmem>> -> memref<1x128xf32, #tpu.memory_space<vmem>>
      %22 = tpu.memref_slice %arg5[%19] : memref<8x!tpu.dma_semaphore, #tpu.memory_space<semaphore_mem>> -> memref<1x!tpu.dma_semaphore, #tpu.memory_space<semaphore_mem>>
      %23 = tpu.memref_squeeze %22 : memref<1x!tpu.dma_semaphore, #tpu.memory_space<semaphore_mem>> -> memref<!tpu.dma_semaphore, #tpu.memory_space<semaphore_mem>>
      tpu.wait_dma2 semaphore(%23 : memref<!tpu.dma_semaphore, #tpu.memory_space<semaphore_mem>>) src(%20 : memref<1x128xf32, #tpu.memory_space<any>>) dst(%21 : memref<1x128xf32, #tpu.memory_space<vmem>>)
      %c8_i32_19 = arith.constant 8 : i32
      %24 = arith.addi %6, %c8_i32_19 : i32
      %c8_i32_20 = arith.constant 8 : i32
      %25 = arith.cmpi slt, %24, %c8_i32_20 : i32
      %26 = arith.extui %25 : i1 to i32
      %c0_i32_21 = arith.constant 0 : i32
      %27 = arith.cmpi ne, %26, %c0_i32_21 : i32
      scf.if %27 {
        %c8_i32_22 = arith.constant 8 : i32
        %28 = arith.addi %6, %c8_i32_22 : i32
        %29 = arith.addi %0, %28 : i32
        %30 = arith.index_cast %29 : i32 to index
        %31 = memref.load %arg1[%30] : memref<24xi32, #tpu.memory_space<smem>>
        %c8_i32_23 = arith.constant 8 : i32
        %c0_i32_24 = arith.constant 0 : i32
        %32 = arith.cmpi eq, %c8_i32_23, %c0_i32_24 : i32
        %c1_i32_25 = arith.constant 1 : i32
        %33 = arith.select %32, %c1_i32_25, %c8_i32_23 : i32
        %34 = arith.remsi %28, %33 : i32
        %c0_i32_26 = arith.constant 0 : i32
        %35 = arith.cmpi ne, %34, %c0_i32_26 : i32
        %c0_i32_27 = arith.constant 0 : i32
        %36 = arith.cmpi slt, %34, %c0_i32_27 : i32
        %c0_i32_28 = arith.constant 0 : i32
        %37 = arith.cmpi slt, %33, %c0_i32_28 : i32
        %38 = arith.xori %36, %37 : i1
        %39 = arith.andi %38, %35 : i1
        %40 = arith.addi %34, %33 : i32
        %41 = arith.select %39, %40, %34 : i32
        %c0_i32_29 = arith.constant 0 : i32
        %42 = tpu.memref_slice %arg2[%31, %c0_i32_29] : memref<64x128xf32, #tpu.memory_space<any>> -> memref<1x128xf32, #tpu.memory_space<any>>
        %c0_i32_30 = arith.constant 0 : i32
        %43 = tpu.memref_slice %arg4[%28, %c0_i32_30] : memref<8x128xf32, #tpu.memory_space<vmem>> -> memref<1x128xf32, #tpu.memory_space<vmem>>
        %44 = tpu.memref_slice %arg5[%41] : memref<8x!tpu.dma_semaphore, #tpu.memory_space<semaphore_mem>> -> memref<1x!tpu.dma_semaphore, #tpu.memory_space<semaphore_mem>>
        %45 = tpu.memref_squeeze %44 : memref<1x!tpu.dma_semaphore, #tpu.memory_space<semaphore_mem>> -> memref<!tpu.dma_semaphore, #tpu.memory_space<semaphore_mem>>
        tpu.enqueue_dma source(%42 : memref<1x128xf32, #tpu.memory_space<any>>) target(%43 : memref<1x128xf32, #tpu.memory_space<vmem>>) target_semaphore(%45 : memref<!tpu.dma_semaphore, #tpu.memory_space<semaphore_mem>>)
      } else {
      }
    }
    %c8_i32_5 = arith.constant 8 : i32
    %c0 = arith.constant 0 : index
    %c0_6 = arith.constant 0 : index
    %3 = vector.load %arg4[%c0, %c0_6] : memref<8x128xf32, #tpu.memory_space<vmem>>, vector<8x128xf32>
    %c0_7 = arith.constant 0 : index
    %c0_8 = arith.constant 0 : index
    %4 = vector.load %arg3[%c0_7, %c0_8] : memref<8x128xf32, #tpu.memory_space<vmem>>, vector<8x128xf32>
    tpu.vector_store %arg3[%c0_7, %c0_8], %3 {strides = array<i32>} : memref<8x128xf32, #tpu.memory_space<vmem>>, vector<8x128xf32>,
    return
  }
  func.func @transform_1(%arg0: i32, %arg1: memref<24xi32, #tpu.memory_space<smem>>) -> (i32, i32) {
    %c0_i32 = arith.constant 0 : i32
    %c0_i32_0 = arith.constant 0 : i32
    return %arg0, %c0_i32 : i32, i32
  }
}

</mosaic_0001>

<llo_original>
// kernel: tpu_custom_call.1
$region0: #{tpu_custom_call.1}
  #allocation0 [shape = 'u32[]', space=smem, size = 0x4, offset = 0x4, fixed_abs, tag = 'smem constant byte address 0x4 - core index']
  #allocation1 [shape = 'u32[144,128]{1,0:T(1,128)}', space=vmem, size = 0x12000, scoped, tag = 'internal scratch']
  #allocation2 [shape = 'f32[8,128]{1,0:T(8,128)}', space=vmem, size = 0x1000, scoped, tag = 'scratch operand']
  #allocation3 [shape = 's32[8]{0}', space=sflag, size = 0x20, scoped, tag = 'scratch operand']
  #allocation4 [shape = 's32[1]{0}', space=sflag, size = 0x4, scoped, tag = 'scoped memory for tpu_custom_call.1']
  #allocation5 [shape = 'u8[512]{0}', space=smem, size = 0x200, scoped, tag = 'prefetched SMEM operand 0']
  #allocation8 [shape = 's32[]', space=sflag, size = 0x4, offset = 0, fixed_abs, tag = 'sflag constant byte address 0x0 - dummy sync flag']
  #allocation9 [shape = 's32[]', space=sflag, size = 0x4, offset = 0, fixed_abs, tag = 'sflag constant byte address 0x0 - dummy sync flag']
  #allocation10 [shape = 'u32[]', space=smem, size = 0x4, offset = 0x44, fixed_abs, tag = 'smem constant byte address 0x44 - assertion arg 0']
  #allocation11 [shape = 'u32[]', space=smem, size = 0x4, offset = 0x48, fixed_abs, tag = 'smem constant byte address 0x48 - assertion arg 1']
  #allocation12 [shape = 's32[]', space=sflag, size = 0x4, offset = 0, fixed_abs, tag = 'sflag constant byte address 0x0 - dummy sync flag']
  #allocation13 [shape = 's32[]', space=sflag, size = 0x4, offset = 0, fixed_abs, tag = 'sflag constant byte address 0x0 - dummy sync flag']
  %s0 = inlined_call_operand.hbm [shape: s32[24], index: 0, kind: input, shape index: {}]
  %s1 = inlined_call_operand.hbm [shape: f32[64,128], index: 1, kind: input, shape index: {}]
  %s2 = inlined_call_operand.hbm [shape: f32[24,128], index: 2, kind: output, shape index: {}]
  %s3 = sld [smem:[#allocation0]]
  $region51: #{tpu_custom_call.1} parent=0
    _
  %s5 = ssub.s32 1, %s3
  %s6 = scalar_select 0, %s5, %s3
  %8 = dma.hbm_to_smem %s0, 16, [#allocation5], [#allocation4]
  %9 = dma.done [#allocation4], 16
  %10 = sfence
  $region1: #{tpu_custom_call.1} parent=0
    #allocation6 [shape = 'u8[8192]{0}', space=vmem, size = 0x2000, scoped, tag = 'output window, operand 0']
    #allocation7 [shape = 's32[2]{0}', space=sflag, size = 0x8, scoped, tag = 'scoped memory for tpu_custom_call.1']
    %11 = vsyncpa [#allocation7], 0
    %s12 = scalar_lea.sflag [#allocation7], 1
    %13 = vsyncpa %s12, 0
    loop: start=0, step=1, limit=4
    $region2: #{tpu_custom_call.1} parent=1 // loop_pre_header
      _
    $region3: #{tpu_custom_call.1} parent=1 // loop_header
      %s15 = sphi 0, %s19
      %p16 = scmp.ge.s32.totalorder %s15, 4
      %s24 = sphi 0, %s26
      %s27 = sphi 0, %s24
      %s37 = sphi 0, %s27
    $region4: #{tpu_custom_call.1} parent=1 // loop_header_branch
      %18 = sbr.rel (%p16) target = $region8
    $region5: #{tpu_custom_call.1} parent=1 // loop_body
      %s20 = ssub.s32 %s15, 1
      %s21 = sadd.s32 %s15, 1
      %s22 = ssub.s32 %s15, %s21
      %p23 = scmp.eq.s32.totalorder %s22, 0
      %s25 = sadd.s32 %s24, 1
      %s26 = scalar_select %p23, %s24, %s25
      %p28 = pneg %p23
      %p29 = scmp.eq.s32.totalorder %s15, 2
      %p30 = por %p28, %p29
      %p31 = scmp.ne.s32.totalorder %s24, %s27
      %p32 = scmp.eq.s32.totalorder %s15, 0
      %p33 = por %p31, %p32
      %p34 = scmp.ne.s32.totalorder %s24, %s27
      %p35 = scmp.eq.s32.totalorder %s20, 2
      %p36 = por %p34, %p35
      %p38 = scmp.ne.s32.totalorder %s27, %s37
      %p39 = scmp.eq.s32.totalorder %s20, 0
      %p40 = por %p38, %p39
      %p41 = scmp.lt.s32.totalorder %s15, 3
      // Predicated region
      $region9: #{tpu_custom_call.1} parent=5 // pred_check
        %p42 = pneg %p41
      $region10: #{tpu_custom_call.1} parent=5 // pred_check_branch
        %44 = sbr.rel (%p42) target = $region12
      $region11: #{tpu_custom_call.1} parent=5 // pred_region
        %p45 = pneg %p33
        %p46 = pneg %p30
        %s47 = sand.u32 %s24, 1
        %s48 = scalar_lea.sflag [#allocation7], %s47
        %s49 = sand.u32 %s24, 1
        %s50 = smul.addr %s49, 8
        %s51 = scalar_lea.vmem [#allocation6], %s50
        %s52 = smul.u32 %s15, 8
        loop: start=0, step=1, limit=8
        $region13: #{tpu_custom_call.1} parent=11 // loop_pre_header
          _
        $region14: #{tpu_custom_call.1} parent=11 // loop_header
          %s54 = sphi 0, %s58
          %p55 = scmp.ge.s32.totalorder %s54, 8
        $region15: #{tpu_custom_call.1} parent=11 // loop_header_branch
          %57 = sbr.rel (%p55) target = $region19
        $region16: #{tpu_custom_call.1} parent=11 // loop_body
          %s59 = sadd.s32 %s52, %s54
          %s60 = sld [smem:[#allocation5 + %s59]]
          %p61 = scmp.lt.s32.totalorder %s54, 0
          %s62 = ssub.s32 0, %s54
          %s63 = scalar_select %p61, %s62, %s54
          %s64 = sand.u32 %s63, 7
          %s65 = ssub.s32 0, %s64
          %s66 = scalar_select %p61, %s65, %s64
          %p67 = scmp.ne.s32.totalorder %s66, 0
          %p68 = scmp.lt.s32.totalorder %s66, 0
          %p69 = pnand %p68, %p67
          %p70 = pneg %p69
          %s71 = sadd.s32 %s66, 8
          %s72 = scalar_select %p70, %s71, %s66
          %s73 = smul.addr %s60, 16
          %s74 = scalar_lea.hbm %s1, %s73
          %s75 = scalar_lea.vmem [#allocation2], %s54
          %s76 = scalar_lea.sflag [#allocation3], %s72
          // Predicated region
          $region20: #{tpu_custom_call.1} parent=16 // pred_check
            _
          $region21: #{tpu_custom_call.1} parent=16 // pred_check_branch
            %78 = sbr.rel target = $region23
          $region22: #{tpu_custom_call.1} parent=16 // pred_region
            %79 = sst [smem:[#allocation10]] [#allocation9]
            %80 = sst [smem:[#allocation11]] [#allocation8]
          $region23: #{tpu_custom_call.1} parent=16 // pred_fallthru
            _
          %82 = shalt.err (0)
          %s84 = sshll.u32 %s75, 4
          %s85 = int_to_ptr.vmem [resolvable:$true] %s84
          %87 = dma.hbm_to_vmem [thread:$0]  %s74, 16, %s85, %s76
        $region17: #{tpu_custom_call.1} parent=11 // loop_footer
          %s58 = sadd.s32 1, %s54
        $region18: #{tpu_custom_call.1} parent=11 // loop_footer_branch
          %53 = sbr.rel target = $region14
        $region19: #{tpu_custom_call.1} parent=11 // loop_exit
          _
        loop: start=0, step=1, limit=8
        $region24: #{tpu_custom_call.1} parent=11 // loop_pre_header
          _
        $region25: #{tpu_custom_call.1} parent=11 // loop_header
          %s89 = sphi 0, %s93
          %p90 = scmp.ge.s32.totalorder %s89, 8
        $region26: #{tpu_custom_call.1} parent=11 // loop_header_branch
          %92 = sbr.rel (%p90) target = $region30
        $region27: #{tpu_custom_call.1} parent=11 // loop_body
          %s94 = sadd.s32 %s52, %s89
          %s95 = sld [smem:[#allocation5 + %s94]]
          %p96 = scmp.lt.s32.totalorder %s89, 0
          %s97 = ssub.s32 0, %s89
          %s98 = scalar_select %p96, %s97, %s89
          %s99 = sand.u32 %s98, 7
          %s100 = ssub.s32 0, %s99
          %s101 = scalar_select %p96, %s100, %s99
          %p102 = scmp.ne.s32.totalorder %s101, 0
          %p103 = scmp.lt.s32.totalorder %s101, 0
          %p104 = pnand %p103, %p102
          %p105 = pneg %p104
          %s106 = sadd.s32 %s101, 8
          %s107 = scalar_select %p105, %s106, %s101
          %s108 = scalar_lea.sflag [#allocation3], %s107
          %s109 = smul.u32 1, 1
          %s110 = sshll.u32 %s109, 4
          %111 = dma.done %s108, %s110
          %s112 = sadd.s32 %s89, 8
          %p113 = scmp.lt.s32.totalorder %s112, 8
          // Predicated region
          $region31: #{tpu_custom_call.1} parent=27 // pred_check
            %p114 = pneg %p113
          $region32: #{tpu_custom_call.1} parent=27 // pred_check_branch
            %116 = sbr.rel (%p114) target = $region34
          $region33: #{tpu_custom_call.1} parent=27 // pred_region
            %s117 = sadd.s32 %s52, %s112
            %s118 = sld [smem:[#allocation5 + %s117]]
            %p119 = scmp.lt.s32.totalorder %s112, 0
            %s120 = ssub.s32 0, %s112
            %s121 = scalar_select %p119, %s120, %s112
            %s122 = sand.u32 %s121, 7
            %s123 = ssub.s32 0, %s122
            %s124 = scalar_select %p119, %s123, %s122
            %p125 = scmp.ne.s32.totalorder %s124, 0
            %p126 = scmp.lt.s32.totalorder %s124, 0
            %p127 = pnand %p126, %p125
            %p128 = pneg %p127
            %s129 = sadd.s32 %s124, 8
            %s130 = scalar_select %p128, %s129, %s124
            %s131 = smul.addr %s118, 16
            %s132 = scalar_lea.hbm %s1, %s131
            %s133 = scalar_lea.vmem [#allocation2], %s112
            %s134 = scalar_lea.sflag [#allocation3], %s130
            // Predicated region
            $region35: #{tpu_custom_call.1} parent=33 // pred_check
              _
            $region36: #{tpu_custom_call.1} parent=33 // pred_check_branch
              %136 = sbr.rel target = $region38
            $region37: #{tpu_custom_call.1} parent=33 // pred_region
              %137 = sst [smem:[#allocation10]] [#allocation13]
              %138 = sst [smem:[#allocation11]] [#allocation12]
            $region38: #{tpu_custom_call.1} parent=33 // pred_fallthru
              _
            %140 = shalt.err (0)
            %s142 = sshll.u32 %s133, 4
            %s143 = int_to_ptr.vmem [resolvable:$true] %s142
            %145 = dma.hbm_to_vmem [thread:$0]  %s132, 16, %s143, %s134
          $region34: #{tpu_custom_call.1} parent=27 // pred_fallthru
            _
        $region28: #{tpu_custom_call.1} parent=11 // loop_footer
          %s93 = sadd.s32 1, %s89
        $region29: #{tpu_custom_call.1} parent=11 // loop_footer_branch
          %88 = sbr.rel target = $region25
        $region30: #{tpu_custom_call.1} parent=11 // loop_exit
          _
        %v146 = vld [vmem:[#allocation2] sm:$0xff]
        %147 = vst [vmem:[%s51] sm:$0xff] %v146
        %s148 = sand.u32 %s24, 1
        %s149 = scalar_lea.sflag [#allocation7], %s148
        %s150 = sand.u32 %s24, 1
        %s151 = smul.addr %s150, 8
        %s152 = scalar_lea.vmem [#allocation6], %s151
        // Predicated region
        $region39: #{tpu_custom_call.1} parent=11 // pred_check
          %p153 = pneg %p30
        $region40: #{tpu_custom_call.1} parent=11 // pred_check_branch
          %155 = sbr.rel (%p153) target = $region42
        $region41: #{tpu_custom_call.1} parent=11 // pred_region
          %s157 = ssub.s32 128, 128
          %158 = vsyncadd %s149, %s157
          %s159 = smul.addr %s15, 128
          %s160 = scalar_lea.hbm %s2, %s159
          %s162 = sshll.u32 %s152, 4
          %s163 = int_to_ptr.vmem [resolvable:$true] %s162
          %165 = dma.vmem_to_hbm [thread:$0]  %s163, 128, %s160, %s149
        $region42: #{tpu_custom_call.1} parent=11 // pred_fallthru
          _
      $region12: #{tpu_custom_call.1} parent=5 // pred_fallthru
        _
      %p166 = scmp.le.s32.totalorder 1, %s15
      // Predicated region
      $region43: #{tpu_custom_call.1} parent=5 // pred_check
        %p167 = pneg %p166
      $region44: #{tpu_custom_call.1} parent=5 // pred_check_branch
        %169 = sbr.rel (%p167) target = $region46
      $region45: #{tpu_custom_call.1} parent=5 // pred_region
        %s170 = ssub.s32 %s15, 1
        // Predicated region
        $region47: #{tpu_custom_call.1} parent=45 // pred_check
          %p171 = pneg %p36
        $region48: #{tpu_custom_call.1} parent=45 // pred_check_branch
          %173 = sbr.rel (%p171) target = $region50
        $region49: #{tpu_custom_call.1} parent=45 // pred_region
          %s174 = sand.u32 %s27, 1
          %s175 = scalar_lea.sflag [#allocation7], %s174
          %s176 = sand.u32 %s27, 1
          %s177 = smul.addr %s176, 8
          %s178 = scalar_lea.vmem [#allocation6], %s177
          %179 = dma.done %s175, 128
        $region50: #{tpu_custom_call.1} parent=45 // pred_fallthru
          _
      $region46: #{tpu_custom_call.1} parent=5 // pred_fallthru
        _
    $region6: #{tpu_custom_call.1} parent=1 // loop_footer
      %s19 = sadd.s32 1, %s15
    $region7: #{tpu_custom_call.1} parent=1 // loop_footer_branch
      %14 = sbr.rel target = $region3
    $region8: #{tpu_custom_call.1} parent=1 // loop_exit
      _
    %180 = vsyncpa [#allocation7], 1
    %s181 = scalar_lea.sflag [#allocation7], 1
    %182 = vsyncpa %s181, 1
  %183 = vsyncmov [#allocation3]
  %s184 = vpop.sfrf %183
  %p185 = scmp.eq.s32.totalorder %s184, 0
  %p186 = pneg %p185
  %188 = shalt.err (%p186)
  %s189 = scalar_lea.sflag [#allocation3], 1
  %190 = vsyncmov %s189
  %s191 = vpop.sfrf %190
  %p192 = scmp.eq.s32.totalorder %s191, 0
  %p193 = pneg %p192
  %195 = shalt.err (%p193)
  %s196 = scalar_lea.sflag [#allocation3], 2
  %197 = vsyncmov %s196
  %s198 = vpop.sfrf %197
  %p199 = scmp.eq.s32.totalorder %s198, 0
  %p200 = pneg %p199
  %202 = shalt.err (%p200)
  %s203 = scalar_lea.sflag [#allocation3], 3
  %204 = vsyncmov %s203
  %s205 = vpop.sfrf %204
  %p206 = scmp.eq.s32.totalorder %s205, 0
  %p207 = pneg %p206
  %209 = shalt.err (%p207)
  %s210 = scalar_lea.sflag [#allocation3], 4
  %211 = vsyncmov %s210
  %s212 = vpop.sfrf %211
  %p213 = scmp.eq.s32.totalorder %s212, 0
  %p214 = pneg %p213
  %216 = shalt.err (%p214)
  %s217 = scalar_lea.sflag [#allocation3], 5
  %218 = vsyncmov %s217
  %s219 = vpop.sfrf %218
  %p220 = scmp.eq.s32.totalorder %s219, 0
  %p221 = pneg %p220
  %223 = shalt.err (%p221)
  %s224 = scalar_lea.sflag [#allocation3], 6
  %225 = vsyncmov %s224
  %s226 = vpop.sfrf %225
  %p227 = scmp.eq.s32.totalorder %s226, 0
  %p228 = pneg %p227
  %230 = shalt.err (%p228)
  %s231 = scalar_lea.sflag [#allocation3], 7
  %232 = vsyncmov %s231
  %s233 = vpop.sfrf %232
  %p234 = scmp.eq.s32.totalorder %s233, 0
  %p235 = pneg %p234
  %237 = shalt.err (%p235)

</llo_original>
